<compile_context>
chip_gen: v6e
topology: v6e:2x2x1
jax: 0.10.0
libtpu: 0.0.40
codegen_flags: <defaults>
</compile_context>

<pallas_src>
import functools

import jax
import jax.numpy as jnp
from jax import lax
from jax.experimental import pallas as pl
from jax.experimental.pallas import tpu as pltpu

LANE = 128     # lane width (last dim granule)
SUBLANE = 8    # sublane granule (second-to-last dim)


def _round_up(n, m):
    return ((n + m - 1) // m) * m


def mlp_kernel(x_ref, w1_ref, b1_ref, w2_ref, b2_ref, o_ref):
    # x: (TM, K) bf16;  W1: (H, K) bf16;  W2: (N, H) bf16 (PyTorch layout).
    x = x_ref[...]
    # (TM, K) . (H, K) contracting K  ->  (TM, H), f32 accumulation on the MXU.
    h = lax.dot_general(x, w1_ref[...], (((1,), (1,)), ((), ())),
                        preferred_element_type=jnp.float32)
    h = jnp.maximum(h + b1_ref[...], 0.0)            # bias + ReLU on f32 (VPU)
    # (TM, H) . (N, H) contracting H  ->  (TM, N), f32 accumulation.
    y = lax.dot_general(h.astype(w2_ref.dtype), w2_ref[...],
                        (((1,), (1,)), ((), ())),
                        preferred_element_type=jnp.float32)
    o_ref[...] = (y + b2_ref[...]).astype(o_ref.dtype)


def prepare_params(w1, b1, w2, b2, *, weight_dtype=jnp.bfloat16):
    """One-time packing of PyTorch-layout params (call OUTSIDE the hot path).

    Keeps (out, in) layout (no transposes), zero-pads hidden/target to lane
    (128) multiples, casts weights to bf16, biases stay f32 as (1, dim) rows.
    """
    hidden, in_size = w1.shape
    target = w2.shape[0]
    h_pad = _round_up(hidden, LANE)
    n_pad = _round_up(target, LANE)

    w1p = jnp.zeros((h_pad, in_size), weight_dtype).at[:hidden, :].set(
        w1.astype(weight_dtype))
    b1p = jnp.zeros((1, h_pad), jnp.float32).at[0, :hidden].set(
        b1.astype(jnp.float32))
    w2p = jnp.zeros((n_pad, h_pad), weight_dtype).at[:target, :hidden].set(
        w2.astype(weight_dtype))
    b2p = jnp.zeros((1, n_pad), jnp.float32).at[0, :target].set(
        b2.astype(jnp.float32))
    return (w1p, b1p, w2p, b2p), target


@functools.partial(jax.jit, static_argnames=("target_size", "tm"))
def mlp_regression_forward(x, params, *, target_size, tm=256):
    """x: (B, input_size) f32; params: output of prepare_params."""
    w1, b1, w2, b2 = params
    B, K = x.shape
    H = w1.shape[0]          # padded hidden (multiple of 128)
    N = w2.shape[0]          # padded target (multiple of 128) -> lane-dense out

    # Batch tile: multiple of 8 sublanes, capped at `tm` (256 suits v6e/v7x MXU;
    # use 128 on v5e). Pad batch so the grid divides evenly.
    tm = min(tm, _round_up(B, SUBLANE))
    b_pad = _round_up(B, tm)
    xp = x.astype(jnp.bfloat16)
    if b_pad != B:
        xp = jnp.pad(xp, ((0, b_pad - B), (0, 0)))

    out = pl.pallas_call(
        mlp_kernel,
        out_shape=jax.ShapeDtypeStruct((b_pad, N), x.dtype),
        grid=(b_pad // tm,),
        in_specs=[
            pl.BlockSpec((tm, K), lambda i: (i, 0)),   # x tile: pipelined over batch
            pl.BlockSpec((H, K), lambda i: (0, 0)),    # W1: resident in VMEM
            pl.BlockSpec((1, H), lambda i: (0, 0)),    # b1: resident
            pl.BlockSpec((N, H), lambda i: (0, 0)),    # W2: resident
            pl.BlockSpec((1, N), lambda i: (0, 0)),    # b2: resident
        ],
        out_specs=pl.BlockSpec((tm, N), lambda i: (i, 0)),
        compiler_params=pltpu.CompilerParams(
            # Batch tiles are independent -> shard across TensorCores (v7x).
            dimension_semantics=("parallel",),
            # For large weight-resident configs (esp. v7x's 64 MiB VMEM), set
            # vmem_limit_bytes explicitly after budgeting tiles; defaults are
            # ample at these sizes.
        ),
    )(xp, w1, b1, w2, b2)

    # Strip batch padding and the lane padding of the output.
    return out[:B, :target_size]


def init_params(key, input_size, hidden_size, target_size):
    """Deterministic init mimicking nn.Linear's default (uniform +/- 1/sqrt(fan_in))."""
    k1, k2, k3, k4 = jax.random.split(key, 4)
    bound1 = 1.0 / jnp.sqrt(jnp.float32(input_size))
    bound2 = 1.0 / jnp.sqrt(jnp.float32(hidden_size))
    w1 = jax.random.uniform(k1, (hidden_size, input_size), jnp.float32, -bound1, bound1)
    b1 = jax.random.uniform(k2, (hidden_size,), jnp.float32, -bound1, bound1)
    w2 = jax.random.uniform(k3, (target_size, hidden_size), jnp.float32, -bound2, bound2)
    b2 = jax.random.uniform(k4, (target_size,), jnp.float32, -bound2, bound2)
    return w1, b1, w2, b2


if __name__ == "__main__":
    # Small shapes consistent with the module's forward.
    batch, input_size, hidden_size, target_size = 8, 16, 32, 8

    key = jax.random.PRNGKey(0)
    kx, kp = jax.random.split(key)
    x = jax.random.normal(kx, (batch, input_size), jnp.float32)
    w1, b1, w2, b2 = init_params(kp, input_size, hidden_size, target_size)

    # Pack/pad/cast params once, reuse across calls.
    params, tgt = prepare_params(w1, b1, w2, b2)

    out = mlp_regression_forward(x, params, target_size=tgt)
    out = jax.block_until_ready(out)

    # Pure-JAX f32 reference (same math as the PyTorch forward). bf16 operands
    # with f32 accumulation -> loosened tolerance.
    ref = jnp.maximum(x @ w1.T + b1, 0.0) @ w2.T + b2
    assert out.shape == (batch, target_size)
    assert jnp.allclose(out, ref, atol=5e-2, rtol=5e-2), float(jnp.max(jnp.abs(out - ref)))

    print("KERNEL_OK")
</pallas_src>

<mosaic_0001>
module attributes {stable_mosaic.version = 11 : i64} {
  func.func @mlp_kernel(%arg0: i32, %arg1: memref<8x16xbf16, #tpu.memory_space<vmem>>, %arg2: memref<128x16xbf16, #tpu.memory_space<vmem>>, %arg3: memref<1x128xf32, #tpu.memory_space<vmem>>, %arg4: memref<128x128xbf16, #tpu.memory_space<vmem>>, %arg5: memref<1x128xf32, #tpu.memory_space<vmem>>, %arg6: memref<8x128xf32, #tpu.memory_space<vmem>>) attributes {dimension_semantics = [#tpu.dimension_semantics<parallel>], iteration_bounds = array<i64: 1>, scalar_prefetch = 0 : i64, scratch_operands = 0 : i64, tpu.core_type = #tpu.core_type<tc>, window_params = [{transform_indices = @transform_0, window_bounds = array<i64: 8, 16>}, {pipeline_mode = #tpu.pipeline_mode<synchronous>, transform_indices = @transform_1, window_bounds = array<i64: 128, 16>}, {pipeline_mode = #tpu.pipeline_mode<synchronous>, transform_indices = @transform_2, window_bounds = array<i64: 1, 128>}, {pipeline_mode = #tpu.pipeline_mode<synchronous>, transform_indices = @transform_3, window_bounds = array<i64: 128, 128>}, {pipeline_mode = #tpu.pipeline_mode<synchronous>, transform_indices = @transform_4, window_bounds = array<i64: 1, 128>}, {transform_indices = @transform_5, window_bounds = array<i64: 8, 128>}]} {
    %c0 = arith.constant 0 : index
    %c0_0 = arith.constant 0 : index
    %0 = vector.load %arg1[%c0, %c0_0] : memref<8x16xbf16, #tpu.memory_space<vmem>>, vector<8x16xbf16>
    %c0_1 = arith.constant 0 : index
    %c0_2 = arith.constant 0 : index
    %1 = vector.load %arg2[%c0_1, %c0_2] : memref<128x16xbf16, #tpu.memory_space<vmem>>, vector<128x16xbf16>
    %cst = arith.constant dense<0.000000e+00> : vector<8x128xf32>
    %2 = tpu.matmul %0, %1, %cst {dimension_numbers = #tpu.dot_dimension_numbers<[1], [1], [0], [0], [0, 0, 1, 0], [], []>} : vector<8x16xbf16>, vector<128x16xbf16>, vector<8x128xf32> -> vector<8x128xf32>
    %c0_3 = arith.constant 0 : index
    %c0_4 = arith.constant 0 : index
    %3 = vector.load %arg3[%c0_3, %c0_4] : memref<1x128xf32, #tpu.memory_space<vmem>>, vector<1x128xf32>
    %4 = vector.broadcast %3 : vector<1x128xf32> to vector<8x128xf32>
    %5 = arith.addf %2, %4 : vector<8x128xf32>
    %cst_5 = arith.constant 0.000000e+00 : f32
    %6 = vector.broadcast %cst_5 : f32 to vector<8x128xf32>
    %7 = arith.maximumf %5, %6 : vector<8x128xf32>
    %8 = arith.truncf %7 : vector<8x128xf32> to vector<8x128xbf16>
    %c0_6 = arith.constant 0 : index
    %c0_7 = arith.constant 0 : index
    %9 = vector.load %arg4[%c0_6, %c0_7] : memref<128x128xbf16, #tpu.memory_space<vmem>>, vector<128x128xbf16>
    %cst_8 = arith.constant dense<0.000000e+00> : vector<8x128xf32>
    %10 = tpu.matmul %8, %9, %cst_8 {dimension_numbers = #tpu.dot_dimension_numbers<[1], [1], [0], [0], [0, 0, 1, 0], [], []>} : vector<8x128xbf16>, vector<128x128xbf16>, vector<8x128xf32> -> vector<8x128xf32>
    %c0_9 = arith.constant 0 : index
    %c0_10 = arith.constant 0 : index
    %11 = vector.load %arg5[%c0_9, %c0_10] : memref<1x128xf32, #tpu.memory_space<vmem>>, vector<1x128xf32>
    %12 = vector.broadcast %11 : vector<1x128xf32> to vector<8x128xf32>
    %13 = arith.addf %10, %12 : vector<8x128xf32>
    %c0_11 = arith.constant 0 : index
    %c0_12 = arith.constant 0 : index
    %14 = vector.load %arg6[%c0_11, %c0_12] : memref<8x128xf32, #tpu.memory_space<vmem>>, vector<8x128xf32>
    tpu.vector_store %arg6[%c0_11, %c0_12], %13 {strides = array<i32>} : memref<8x128xf32, #tpu.memory_space<vmem>>, vector<8x128xf32>,
    return
  }
  func.func @transform_0(%arg0: i32) -> (i32, i32) {
    %c0_i32 = arith.constant 0 : i32
    %c0_i32_0 = arith.constant 0 : i32
    return %arg0, %c0_i32 : i32, i32
  }
  func.func @transform_1(%arg0: i32) -> (i32, i32) {
    %c0_i32 = arith.constant 0 : i32
    %c0_i32_0 = arith.constant 0 : i32
    %c0_i32_1 = arith.constant 0 : i32
    return %c0_i32, %c0_i32_0 : i32, i32
  }
  func.func @transform_2(%arg0: i32) -> (i32, i32) {
    %c0_i32 = arith.constant 0 : i32
    %c0_i32_0 = arith.constant 0 : i32
    %c0_i32_1 = arith.constant 0 : i32
    return %c0_i32, %c0_i32_0 : i32, i32
  }
  func.func @transform_3(%arg0: i32) -> (i32, i32) {
    %c0_i32 = arith.constant 0 : i32
    %c0_i32_0 = arith.constant 0 : i32
    %c0_i32_1 = arith.constant 0 : i32
    return %c0_i32, %c0_i32_0 : i32, i32
  }
  func.func @transform_4(%arg0: i32) -> (i32, i32) {
    %c0_i32 = arith.constant 0 : i32
    %c0_i32_0 = arith.constant 0 : i32
    %c0_i32_1 = arith.constant 0 : i32
    return %c0_i32, %c0_i32_0 : i32, i32
  }
  func.func @transform_5(%arg0: i32) -> (i32, i32) {
    %c0_i32 = arith.constant 0 : i32
    %c0_i32_0 = arith.constant 0 : i32
    return %arg0, %c0_i32 : i32, i32
  }
}

</mosaic_0001>

<llo_original>
// kernel: mlp_regression_forward.1
$region0: #{mlp_regression_forward.1}
  #allocation0 [shape = 'u32[]', space=smem, size = 0x4, offset = 0x4, fixed_abs, tag = 'smem constant byte address 0x4 - core index']
  #allocation1 [shape = 'u32[144,128]{1,0:T(1,128)}', space=vmem, size = 0x12000, scoped, tag = 'internal scratch']
  %s0 = inlined_call_operand.vmem [shape: bf16[8,16], index: 0, kind: input, shape index: {}]
  %s1 = inlined_call_operand.vmem [shape: bf16[128,16], index: 1, kind: input, shape index: {}]
  %s2 = inlined_call_operand.vmem [shape: f32[1,128], index: 2, kind: input, shape index: {}]
  %s3 = inlined_call_operand.vmem [shape: bf16[128,128], index: 3, kind: input, shape index: {}]
  %s4 = inlined_call_operand.vmem [shape: f32[1,128], index: 4, kind: input, shape index: {}]
  %s5 = inlined_call_operand.hbm [shape: f32[8,128], index: 5, kind: output, shape index: {}]
  %s6 = sld [smem:[#allocation0]]
  $region30: #{mlp_regression_forward.1} parent=0
    _
  %s8 = ssub.s32 1, %s6
  %s9 = scalar_select 0, %s8, %s6
  $region1: #{mlp_regression_forward.1} parent=0
    #allocation2 [shape = 'u8[4096]{0}', space=vmem, size = 0x1000, scoped, tag = 'output window, operand 0, single buffered']
    #allocation3 [shape = 's32[1]{0}', space=sflag, size = 0x4, scoped, tag = 'scoped memory for mlp_regression_forward.1']
    %10 = vsyncpa [#allocation3], 0
    // Predicated region
    $region2: #{mlp_regression_forward.1} parent=1 // pred_check
      _
    $region3: #{mlp_regression_forward.1} parent=1 // pred_check_branch
      %12 = sbr.rel (0) target = $region5
    $region4: #{mlp_regression_forward.1} parent=1 // pred_region
      _
    $region5: #{mlp_regression_forward.1} parent=1 // pred_fallthru
      _
    // Predicated region
    $region6: #{mlp_regression_forward.1} parent=1 // pred_check
      _
    $region7: #{mlp_regression_forward.1} parent=1 // pred_check_branch
      %14 = sbr.rel (0) target = $region9
    $region8: #{mlp_regression_forward.1} parent=1 // pred_region
      _
    $region9: #{mlp_regression_forward.1} parent=1 // pred_fallthru
      _
    // Predicated region
    $region10: #{mlp_regression_forward.1} parent=1 // pred_check
      _
    $region11: #{mlp_regression_forward.1} parent=1 // pred_check_branch
      %16 = sbr.rel (0) target = $region13
    $region12: #{mlp_regression_forward.1} parent=1 // pred_region
      _
    $region13: #{mlp_regression_forward.1} parent=1 // pred_fallthru
      _
    // Predicated region
    $region14: #{mlp_regression_forward.1} parent=1 // pred_check
      _
    $region15: #{mlp_regression_forward.1} parent=1 // pred_check_branch
      %18 = sbr.rel (0) target = $region17
    $region16: #{mlp_regression_forward.1} parent=1 // pred_region
      _
    $region17: #{mlp_regression_forward.1} parent=1 // pred_fallthru
      _
    // Predicated region
    $region18: #{mlp_regression_forward.1} parent=1 // pred_check
      _
    $region19: #{mlp_regression_forward.1} parent=1 // pred_check_branch
      %20 = sbr.rel (0) target = $region21
    $region20: #{mlp_regression_forward.1} parent=1 // pred_region
      _
    $region21: #{mlp_regression_forward.1} parent=1 // pred_fallthru
      _
    %v22 = vld [vmem:[%s0] sm:$0xf]
    %v23 = vld [vmem:[%s1] sm:$0xf]
    %v24 = vld [vmem:[%s1 + $0x4] sm:$0xf]
    %v25 = vld [vmem:[%s1 + $0x8] sm:$0xf]
    %v26 = vld [vmem:[%s1 + $0xc] sm:$0xf]
    %v27 = vld [vmem:[%s1 + $0x10] sm:$0xf]
    %v28 = vld [vmem:[%s1 + $0x14] sm:$0xf]
    %v29 = vld [vmem:[%s1 + $0x18] sm:$0xf]
    %v30 = vld [vmem:[%s1 + $0x1c] sm:$0xf]
    %v31 = vld [vmem:[%s1 + $0x20] sm:$0xf]
    %v32 = vld [vmem:[%s1 + $0x24] sm:$0xf]
    %v33 = vld [vmem:[%s1 + $0x28] sm:$0xf]
    %v34 = vld [vmem:[%s1 + $0x2c] sm:$0xf]
    %v35 = vld [vmem:[%s1 + $0x30] sm:$0xf]
    %v36 = vld [vmem:[%s1 + $0x34] sm:$0xf]
    %v37 = vld [vmem:[%s1 + $0x38] sm:$0xf]
    %v38 = vld [vmem:[%s1 + $0x3c] sm:$0xf]
    %v39 = vld [vmem:[%s2] sm:$0x1]
    %v41 = vlaneseq
    %v42 = vshrl.u32 %v41, 7
    %v43 = vsub.s32 0, %v42
    %v44 = vrot.slane %v39, %v43
    %v62 = vunpack.c.l.b16 %v23
    %v63 = vunpack.c.l.b16 %v24
    %v64 = vunpack.c.l.b16 %v25
    %v65 = vunpack.c.l.b16 %v26
    %v66 = vunpack.c.l.b16 %v27
    %v67 = vunpack.c.l.b16 %v28
    %v68 = vunpack.c.l.b16 %v29
    %v69 = vunpack.c.l.b16 %v30
    %v70 = vunpack.c.l.b16 %v31
    %v71 = vunpack.c.l.b16 %v32
    %v72 = vunpack.c.l.b16 %v33
    %v73 = vunpack.c.l.b16 %v34
    %v74 = vunpack.c.l.b16 %v35
    %v75 = vunpack.c.l.b16 %v36
    %v76 = vunpack.c.l.b16 %v37
    %v77 = vunpack.c.l.b16 %v38
    %v78 = vpack.c.b16 %v63, %v62
    %v79 = vpack.c.b16 %v65, %v64
    %v80 = vpack.c.b16 %v67, %v66
    %v81 = vpack.c.b16 %v69, %v68
    %v82 = vpack.c.b16 %v71, %v70
    %v83 = vpack.c.b16 %v73, %v72
    %v84 = vpack.c.b16 %v75, %v74
    %v85 = vpack.c.b16 %v77, %v76
    %vm86 = vcmask 130048
    %v88 = vsel %vm86, %v22, 0
    %v91 = vsel %vm86, %v78, 0
    %v94 = vsel %vm86, %v79, 0
    %v97 = vsel %vm86, %v80, 0
    %v100 = vsel %vm86, %v81, 0
    %v103 = vsel %vm86, %v82, 0
    %v106 = vsel %vm86, %v83, 0
    %v109 = vsel %vm86, %v84, 0
    %v112 = vsel %vm86, %v85, 0
    %114 = vmatprep.subr.bf16.mxu0 0
    %115 = vmatpush1.bf16.xpose.msra.mxu0 %v112
    %116 = vmatprep.subr.bf16.mxu0 0
    %117 = vmatpush1.bf16.xpose.msra.mxu0 %v109
    %118 = vmatprep.subr.bf16.mxu0 0
    %119 = vmatpush1.bf16.xpose.msra.mxu0 %v106
    %120 = vmatprep.subr.bf16.mxu0 0
    %121 = vmatpush1.bf16.xpose.msra.mxu0 %v103
    %122 = vmatprep.subr.bf16.mxu0 0
    %123 = vmatpush1.bf16.xpose.msra.mxu0 %v100
    %124 = vmatprep.subr.bf16.mxu0 0
    %125 = vmatpush1.bf16.xpose.msra.mxu0 %v97
    %126 = vmatprep.subr.bf16.mxu0 0
    %127 = vmatpush1.bf16.xpose.msra.mxu0 %v94
    %128 = vmatprep.subr.bf16.mxu0 0
    %129 = vmatpush1.bf16.xpose.msra.mxu0 %v91
    %130 = vmatprep.subr.bf16.mxu0 0
    %131 = vmatpush2.bf16.xpose.msra.mxu0 0
    %132 = vmatprep.subr.bf16.mxu0 0
    %133 = vmatpush2.bf16.xpose.msra.mxu0 0
    %134 = vmatprep.subr.bf16.mxu0 0
    %135 = vmatpush2.bf16.xpose.msra.mxu0 0
    %136 = vmatprep.subr.bf16.mxu0 0
    %137 = vmatpush2.bf16.xpose.msra.mxu0 0
    %138 = vmatprep.subr.bf16.mxu0 0
    %139 = vmatpush2.bf16.xpose.msra.mxu0 0
    %140 = vmatprep.subr.bf16.mxu0 0
    %141 = vmatpush2.bf16.xpose.msra.mxu0 0
    %142 = vmatprep.subr.bf16.mxu0 0
    %143 = vmatpush2.bf16.xpose.msra.mxu0 0
    %144 = vmatprep.subr.bf16.mxu0 0
    %145 = vmatpush2.bf16.xpose.msra.mxu0 0
    %146 = vmatprep.mubr.bf16.mxu0 0
    %147 = vmatmul.mubr.bf16.gmra.mxu0 %v88
    %v148 = vpop.f32.mrf.mxu0
    %v149 = vadd.f32 %v44, %v148
    %v150 = vpop.f32.mrf.mxu0
    %v151 = vpop.f32.mrf.mxu0
    %v152 = vpop.f32.mrf.mxu0
    %153 = vdwg.mxu0
    %v154 = vmax.f32 %v149, 0.0
    %v155 = vpack.c.bf16 %v154, %v154
    %v156 = vld [vmem:[%s3] sm:$0xf]
    %v157 = vld [vmem:[%s3 + $0x4] sm:$0xf]
    %v158 = vld [vmem:[%s3 + $0x8] sm:$0xf]
    %v159 = vld [vmem:[%s3 + $0xc] sm:$0xf]
    %v160 = vld [vmem:[%s3 + $0x10] sm:$0xf]
    %v161 = vld [vmem:[%s3 + $0x14] sm:$0xf]
    %v162 = vld [vmem:[%s3 + $0x18] sm:$0xf]
    %v163 = vld [vmem:[%s3 + $0x1c] sm:$0xf]
    %v164 = vld [vmem:[%s3 + $0x20] sm:$0xf]
    %v165 = vld [vmem:[%s3 + $0x24] sm:$0xf]
    %v166 = vld [vmem:[%s3 + $0x28] sm:$0xf]
    %v167 = vld [vmem:[%s3 + $0x2c] sm:$0xf]
    %v168 = vld [vmem:[%s3 + $0x30] sm:$0xf]
    %v169 = vld [vmem:[%s3 + $0x34] sm:$0xf]
    %v170 = vld [vmem:[%s3 + $0x38] sm:$0xf]
    %v171 = vld [vmem:[%s3 + $0x3c] sm:$0xf]
    %v172 = vld [vmem:[%s4] sm:$0x1]
    %v174 = vlaneseq
    %v175 = vshrl.u32 %v174, 7
    %v176 = vsub.s32 0, %v175
    %v177 = vrot.slane %v172, %v176
    %v195 = vunpack.c.l.b16 %v156
    %v196 = vunpack.c.l.b16 %v157
    %v197 = vunpack.c.l.b16 %v158
    %v198 = vunpack.c.l.b16 %v159
    %v199 = vunpack.c.l.b16 %v160
    %v200 = vunpack.c.l.b16 %v161
    %v201 = vunpack.c.l.b16 %v162
    %v202 = vunpack.c.l.b16 %v163
    %v203 = vunpack.c.l.b16 %v164
    %v204 = vunpack.c.l.b16 %v165
    %v205 = vunpack.c.l.b16 %v166
    %v206 = vunpack.c.l.b16 %v167
    %v207 = vunpack.c.l.b16 %v168
    %v208 = vunpack.c.l.b16 %v169
    %v209 = vunpack.c.l.b16 %v170
    %v210 = vunpack.c.l.b16 %v171
    %v211 = vpack.c.b16 %v196, %v195
    %v212 = vpack.c.b16 %v198, %v197
    %v213 = vpack.c.b16 %v200, %v199
    %v214 = vpack.c.b16 %v202, %v201
    %v215 = vpack.c.b16 %v204, %v203
    %v216 = vpack.c.b16 %v206, %v205
    %v217 = vpack.c.b16 %v208, %v207
    %v218 = vpack.c.b16 %v210, %v209
    %227 = vmatprep.subr.bf16.mxu0 0
    %228 = vmatpush1.bf16.xpose.msra.mxu0 %v218
    %229 = vmatprep.subr.bf16.mxu0 0
    %230 = vmatpush1.bf16.xpose.msra.mxu0 %v217
    %231 = vmatprep.subr.bf16.mxu0 0
    %232 = vmatpush1.bf16.xpose.msra.mxu0 %v216
    %233 = vmatprep.subr.bf16.mxu0 0
    %234 = vmatpush1.bf16.xpose.msra.mxu0 %v215
    %235 = vmatprep.subr.bf16.mxu0 0
    %236 = vmatpush1.bf16.xpose.msra.mxu0 %v214
    %237 = vmatprep.subr.bf16.mxu0 0
    %238 = vmatpush1.bf16.xpose.msra.mxu0 %v213
    %239 = vmatprep.subr.bf16.mxu0 0
    %240 = vmatpush1.bf16.xpose.msra.mxu0 %v212
    %241 = vmatprep.subr.bf16.mxu0 0
    %242 = vmatpush1.bf16.xpose.msra.mxu0 %v211
    %243 = vmatprep.subr.bf16.mxu0 0
    %244 = vmatpush2.bf16.xpose.msra.mxu0 0
    %245 = vmatprep.subr.bf16.mxu0 0
    %246 = vmatpush2.bf16.xpose.msra.mxu0 0
    %247 = vmatprep.subr.bf16.mxu0 0
    %248 = vmatpush2.bf16.xpose.msra.mxu0 0
    %249 = vmatprep.subr.bf16.mxu0 0
    %250 = vmatpush2.bf16.xpose.msra.mxu0 0
    %251 = vmatprep.subr.bf16.mxu0 0
    %252 = vmatpush2.bf16.xpose.msra.mxu0 0
    %253 = vmatprep.subr.bf16.mxu0 0
    %254 = vmatpush2.bf16.xpose.msra.mxu0 0
    %255 = vmatprep.subr.bf16.mxu0 0
    %256 = vmatpush2.bf16.xpose.msra.mxu0 0
    %257 = vmatprep.subr.bf16.mxu0 0
    %258 = vmatpush2.bf16.xpose.msra.mxu0 0
    %259 = vmatprep.mubr.bf16.mxu0 0
    %260 = vmatmul.mubr.bf16.gmra.mxu0 %v155
    %v261 = vpop.f32.mrf.mxu0
    %v262 = vadd.f32 %v177, %v261
    %v263 = vpop.f32.mrf.mxu0
    %v264 = vpop.f32.mrf.mxu0
    %v265 = vpop.f32.mrf.mxu0
    %266 = vdwg.mxu0
    %267 = vst [vmem:[#allocation2] sm:$0xff] %v262
    // Predicated region
    $region22: #{mlp_regression_forward.1} parent=1 // pred_check
      _
    $region23: #{mlp_regression_forward.1} parent=1 // pred_check_branch
      %269 = sbr.rel (0) target = $region25
    $region24: #{mlp_regression_forward.1} parent=1 // pred_region
      %s271 = ssub.s32 128, 128
      %272 = vsyncadd [#allocation3], %s271
      %s274 = sshll.u32 [#allocation2], 4
      %s275 = int_to_ptr.vmem [resolvable:$true] %s274
      %277 = dma.vmem_to_hbm [thread:$0]  %s275, 128, %s5, [#allocation3]
    $region25: #{mlp_regression_forward.1} parent=1 // pred_fallthru
      _
    // Predicated region
    $region26: #{mlp_regression_forward.1} parent=1 // pred_check
      _
    $region27: #{mlp_regression_forward.1} parent=1 // pred_check_branch
      %279 = sbr.rel (0) target = $region29
    $region28: #{mlp_regression_forward.1} parent=1 // pred_region
      %280 = dma.done [#allocation3], 128
    $region29: #{mlp_regression_forward.1} parent=1 // pred_fallthru
      _
    %281 = vsyncpa [#allocation3], 1

</llo_original>
